<compile_context>
chip_gen: v7x
topology: tpu7x:2x2x1
jax: 0.10.0
libtpu: 0.0.40
codegen_flags: <defaults>
</compile_context>

<pallas_src>
import functools
import math

import jax
import jax.numpy as jnp
from jax import lax
from jax.experimental import pallas as pl
from jax.experimental.pallas import tpu as pltpu

_NATTR = 33  # per-face constants packed into the SMEM table (see below)


def _raster_kernel(starts_ref, counts_ref, fd_ref, rgb_ref, a_ref,
                   zbuf_ref, cr_ref, cg_ref, cb_ref, omn_ref, *,
                   num_faces, height, width, tile_h, tile_w, n_row_tiles,
                   delta):
    """Rasterizes one (tile_h, tile_w) tile of one batch element."""
    b = pl.program_id(0)
    th = pl.program_id(1)
    tw = pl.program_id(2)

    # Pixel-centre coordinates of this tile in NDC (y points up).
    row_i = lax.broadcasted_iota(jnp.int32, (tile_h, tile_w), 0) + th * tile_h
    col_i = lax.broadcasted_iota(jnp.int32, (tile_h, tile_w), 1) + tw * tile_w
    px = (col_i.astype(jnp.float32) + 0.5) * (2.0 / width) - 1.0
    py = 1.0 - (row_i.astype(jnp.float32) + 0.5) * (2.0 / height)

    # Per-tile accumulators (VMEM scratch, tile-sized).
    zbuf_ref[...] = jnp.full((tile_h, tile_w), -jnp.inf, jnp.float32)
    cr_ref[...] = jnp.zeros((tile_h, tile_w), jnp.float32)
    cg_ref[...] = jnp.zeros((tile_h, tile_w), jnp.float32)
    cb_ref[...] = jnp.zeros((tile_h, tile_w), jnp.float32)
    omn_ref[...] = jnp.ones((tile_h, tile_w), jnp.float32)

    base = b * (_NATTR * num_faces)
    tile_id = b * n_row_tiles + th
    fstart = starts_ref[tile_id]
    fcount = counts_ref[tile_id]
    neg_delta = jnp.float32(-float(delta))

    # Dynamic trip count: only faces whose (margin-expanded) y-extent can
    # touch this row band.  Accumulator state lives in scratch refs so the
    # loop bound may be data-dependent.
    @pl.loop(0, fcount)
    def _(i):
        off = base + fstart + i

        def ld(a):  # scalar SMEM read of attribute `a` of the current face
            return fd_ref[off + a * num_faces]

        # Barycentric weights as affine functions of (px, py); 1/denom was
        # pre-folded into the coefficients by the wrapper (no vector divides).
        w0 = ld(0) * px + ld(1) * py + ld(2)
        w1 = ld(3) * px + ld(4) * py + ld(5)
        w2 = 1.0 - w0 - w1
        inside = (w0 >= 0.0) & (w1 >= 0.0) & (w2 >= 0.0)

        # Interpolated depth / colors (difference form: 2 mul + 2 add each).
        z = w0 * ld(6) + w1 * ld(7) + ld(8)
        zb = zbuf_ref[...]
        update = inside & (z > zb)
        zbuf_ref[...] = jnp.where(update, z, zb)
        cr_ref[...] = jnp.where(update, w0 * ld(9) + w1 * ld(10) + ld(11),
                                cr_ref[...])
        cg_ref[...] = jnp.where(update, w0 * ld(12) + w1 * ld(13) + ld(14),
                                cg_ref[...])
        cb_ref[...] = jnp.where(update, w0 * ld(15) + w1 * ld(16) + ld(17),
                                cb_ref[...])

        # Soft DIB-R coverage: squared distance to the nearest edge
        # (1/|edge|^2 pre-computed per face; rx/ry reused for dot and delta).
        def edge_d2(k):
            o = 18 + 5 * k
            ax = ld(o)
            ay = ld(o + 1)
            ex = ld(o + 2)
            ey = ld(o + 3)
            inv_l2 = ld(o + 4)
            rx = px - ax
            ry = py - ay
            t = jnp.clip((rx * ex + ry * ey) * inv_l2, 0.0, 1.0)
            dx = rx - t * ex
            dy = ry - t * ey
            return dx * dx + dy * dy

        d2 = jnp.minimum(edge_d2(0), jnp.minimum(edge_d2(1), edge_d2(2)))
        prob = jnp.where(inside, jnp.float32(1.0), jnp.exp(d2 * neg_delta))
        omn_ref[...] = omn_ref[...] * (1.0 - prob)

    # Write the final layout directly (no post-kernel stack/permute).
    rgb_ref[0, 0, :, :] = cr_ref[...]
    rgb_ref[0, 1, :, :] = cg_ref[...]
    rgb_ref[0, 2, :, :] = cb_ref[...]
    a_ref[0, 0, :, :] = 1.0 - omn_ref[...]


def _face_constants(verts_bxpx3, faces_fx3, vcol_bxpx3, delta):
    """Per-face screen-space constants with all reciprocals pre-folded."""
    fpos = verts_bxpx3[:, faces_fx3, :]   # (B, F, 3 verts, xyz)
    fcol = vcol_bxpx3[:, faces_fx3, :]    # (B, F, 3 verts, rgb)

    x0, y0, z0 = fpos[..., 0, 0], fpos[..., 0, 1], fpos[..., 0, 2]
    x1, y1, z1 = fpos[..., 1, 0], fpos[..., 1, 1], fpos[..., 1, 2]
    x2, y2, z2 = fpos[..., 2, 0], fpos[..., 2, 1], fpos[..., 2, 2]
    r0, g0, bl0 = fcol[..., 0, 0], fcol[..., 0, 1], fcol[..., 0, 2]
    r1, g1, bl1 = fcol[..., 1, 0], fcol[..., 1, 1], fcol[..., 1, 2]
    r2, g2, bl2 = fcol[..., 2, 0], fcol[..., 2, 1], fcol[..., 2, 2]

    denom = (y1 - y2) * (x0 - x2) + (x2 - x1) * (y0 - y2)
    valid = jnp.abs(denom) > 1e-10
    inv_denom = jnp.where(valid, 1.0, 0.0) / jnp.where(valid, denom, 1.0)
    A0 = (y1 - y2) * inv_denom
    B0 = (x2 - x1) * inv_denom
    C0 = -(A0 * x2 + B0 * y2)
    A1 = (y2 - y0) * inv_denom
    B1 = (x0 - x2) * inv_denom
    C1 = -(A1 * x2 + B1 * y2)
    # Degenerate faces: force w0 < 0 so the coverage test always fails.
    C0 = jnp.where(valid, C0, jnp.float32(-1e30))

    def edge(ax, ay, bx, by):
        ex = bx - ax
        ey = by - ay
        inv_l2 = 1.0 / (ex * ex + ey * ey + 1e-12)
        return [ax, ay, ex, ey, inv_l2]

    attrs = [A0, B0, C0, A1, B1, C1,
             z0 - z2, z1 - z2, z2,
             r0 - r2, r1 - r2, r2,
             g0 - g2, g1 - g2, g2,
             bl0 - bl2, bl1 - bl2, bl2]
    attrs += edge(x0, y0, x1, y1) + edge(x1, y1, x2, y2) + edge(x2, y2, x0, y0)
    const = jnp.stack(attrs, axis=1).astype(jnp.float32)   # (B, NATTR, F)
    assert const.shape[1] == _NATTR

    # Face y-extents expanded by the soft-alpha radius (exp(-delta d^2) is
    # negligible beyond sqrt(16/delta)).
    margin = math.sqrt(16.0 / max(float(delta), 1e-6))
    ymin = jnp.minimum(jnp.minimum(y0, y1), y2) - margin    # (B, F)
    ymax = jnp.maximum(jnp.maximum(y0, y1), y2) + margin
    return const, ymin, ymax


@functools.partial(jax.jit, static_argnums=(4, 5))
def _rasterize(verts_bxpx3, faces_fx3, uv_bxpx2, texture_bx3xthxtw,
               image_size, delta):
    B, P, _ = verts_bxpx3.shape
    F = faces_fx3.shape[0]
    _, _, TH, TW = texture_bx3xthxtw.shape
    H = W = int(image_size)

    # Plain-JAX glue: per-vertex colors via nearest-neighbour texture lookup.
    # TODO(synk): true per-pixel 'tex' sampling needs an in-kernel gather; it
    # is approximated here by per-vertex sampling + barycentric interpolation.
    u = jnp.clip(jnp.round(uv_bxpx2[..., 0] * (TW - 1)).astype(jnp.int32),
                 0, TW - 1)
    v = jnp.clip(jnp.round(uv_bxpx2[..., 1] * (TH - 1)).astype(jnp.int32),
                 0, TH - 1)
    tex_hwc = jnp.transpose(texture_bx3xthxtw, (0, 2, 3, 1))    # (B, TH, TW, 3)
    vcol = jax.vmap(lambda t, vi, ui: t[vi, ui])(tex_hwc, v, u)  # (B, P, 3)

    const, ymin, ymax = _face_constants(verts_bxpx3.astype(jnp.float32),
                                        faces_fx3,
                                        vcol.astype(jnp.float32), delta)

    # Tile sizes: rows of 8 (vreg sublanes), lane-dim <= 256 so the five
    # accumulator tiles stay tiny in VMEM while stores remain lane-dense.
    tile_h = 8 if H % 8 == 0 else H
    if W % 256 == 0:
        tile_w = 256
    elif W % 128 == 0:
        tile_w = 128
    else:
        tile_w = W
    n_row_tiles = H // tile_h
    n_col_tiles = W // tile_w

    # Per-row-tile face binning: sort faces by expanded y_min and compute a
    # conservative contiguous [start, count) range per row band.
    order = jnp.argsort(ymin, axis=1)                                # (B, F)
    const = jnp.take_along_axis(const, order[:, None, :], axis=2)    # (B, NATTR, F)
    ymin_sorted = jnp.take_along_axis(ymin, order, axis=1)
    span_max = jnp.max(ymax - ymin)

    t_idx = jnp.arange(n_row_tiles, dtype=jnp.float32)
    band_hi = 1.0 - t_idx * (tile_h * 2.0 / H)            # top edge of band
    band_lo = 1.0 - (t_idx + 1.0) * (tile_h * 2.0 / H)    # bottom edge
    starts = jax.vmap(
        lambda ys: jnp.searchsorted(ys, band_lo - span_max, side='left')
    )(ymin_sorted)                                                   # (B, T)
    stops = jax.vmap(
        lambda ys: jnp.searchsorted(ys, band_hi, side='right')
    )(ymin_sorted)
    counts = jnp.maximum(stops - starts, 0)

    facedata = const.reshape(-1)                         # (B*NATTR*F,) f32
    starts = starts.reshape(-1).astype(jnp.int32)        # (B*n_row_tiles,)
    counts = counts.reshape(-1).astype(jnp.int32)

    kernel = functools.partial(
        _raster_kernel, num_faces=F, height=H, width=W, tile_h=tile_h,
        tile_w=tile_w, n_row_tiles=n_row_tiles, delta=float(delta))

    rgb_shape = jax.ShapeDtypeStruct((B, 3, H, W), jnp.float32)
    alpha_shape = jax.ShapeDtypeStruct((B, 1, H, W), jnp.float32)
    rgb_spec = pl.BlockSpec((1, 3, tile_h, tile_w),
                            lambda b, th, tw: (b, 0, th, tw))
    alpha_spec = pl.BlockSpec((1, 1, tile_h, tile_w),
                              lambda b, th, tw: (b, 0, th, tw))
    smem = pl.BlockSpec(memory_space=pltpu.MemorySpace.SMEM)

    rgb, alpha = pl.pallas_call(
        kernel,
        out_shape=(rgb_shape, alpha_shape),
        grid=(B, n_row_tiles, n_col_tiles),
        in_specs=[smem, smem, smem],
        out_specs=(rgb_spec, alpha_spec),
        scratch_shapes=[pltpu.VMEM((tile_h, tile_w), jnp.float32)
                        for _ in range(5)],
        compiler_params=pltpu.CompilerParams(
            dimension_semantics=("parallel", "parallel", "parallel")),
    )(starts, counts, facedata)
    return rgb, alpha


class ParallelKaolinRasterizer:
    """JAX/Pallas port of the PyTorch ParallelKaolinRasterizer module."""

    def __init__(self, image_size, mode='vc'):
        self.image_size = image_size
        self.mode = mode
        self.sigma_factor = 1

    def set_mode(self, mode):
        self.mode = mode

    def set_sigma_mul(self, factor):
        self.sigma_factor = factor

    def __call__(self, points, uv_bxpx2, texture_bx3xthxtw, ft_fx3=None,
                 background_image=None, return_hardmask=False, closure=None,
                 image_size=None, **kwargs):
        if image_size is None:
            image_size = self.image_size
        delta = int(7000 / self.sigma_factor)
        verts_bxpx3, faces_fx3 = points
        rgb, alpha = _rasterize(verts_bxpx3, faces_fx3, uv_bxpx2,
                                texture_bx3xthxtw, int(image_size), delta)
        # TODO(synk): background_image compositing and return_hardmask output
        # are not implemented (not exercised by the default forward path).
        if closure is not None:
            return closure(rgb, alpha, **kwargs)
        return rgb, alpha


if __name__ == "__main__":
    key = jax.random.PRNGKey(0)
    B, P, image_size = 2, 8, 16
    TH = TW = 8
    k1, k2, k3, k4 = jax.random.split(key, 4)

    verts_xy = jax.random.uniform(k1, (B, P, 2), minval=-0.9, maxval=0.9)
    verts_z = jax.random.uniform(k2, (B, P, 1), minval=0.1, maxval=1.0)
    verts = jnp.concatenate([verts_xy, verts_z], axis=-1).astype(jnp.float32)

    faces = jnp.array([[0, 1, 2], [2, 3, 0], [4, 5, 6],
                       [6, 7, 4], [0, 4, 5], [1, 5, 6]], dtype=jnp.int32)

    uv = jax.random.uniform(k3, (B, P, 2), minval=0.0,
                            maxval=1.0).astype(jnp.float32)
    texture = jax.random.uniform(k4, (B, 3, TH, TW)).astype(jnp.float32)

    rasterizer = ParallelKaolinRasterizer(image_size, mode='vc')
    rgb, alpha = rasterizer((verts, faces), uv, texture)
    jax.block_until_ready((rgb, alpha))

    assert rgb.shape == (B, 3, image_size, image_size), rgb.shape
    assert alpha.shape == (B, 1, image_size, image_size), alpha.shape
    assert bool(jnp.all(jnp.isfinite(rgb))) and bool(jnp.all(jnp.isfinite(alpha)))
    assert float(jnp.min(alpha)) >= 0.0 and float(jnp.max(alpha)) <= 1.0 + 1e-5
    print("KERNEL_OK")
</pallas_src>

<mosaic_0001>
module attributes {stable_mosaic.version = 11 : i64} {
  func.func @_raster_kernel(%arg0: i32, %arg1: i32, %arg2: i32, %arg3: memref<4xi32, #tpu.memory_space<smem>>, %arg4: memref<4xi32, #tpu.memory_space<smem>>, %arg5: memref<396xf32, #tpu.memory_space<smem>>, %arg6: memref<1x3x8x16xf32, #tpu.memory_space<vmem>>, %arg7: memref<1x1x8x16xf32, #tpu.memory_space<vmem>>, %arg8: memref<8x16xf32, #tpu.memory_space<vmem>>, %arg9: memref<8x16xf32, #tpu.memory_space<vmem>>, %arg10: memref<8x16xf32, #tpu.memory_space<vmem>>, %arg11: memref<8x16xf32, #tpu.memory_space<vmem>>, %arg12: memref<8x16xf32, #tpu.memory_space<vmem>>) attributes {dimension_semantics = [#tpu.dimension_semantics<parallel>, #tpu.dimension_semantics<parallel>, #tpu.dimension_semantics<parallel>], iteration_bounds = array<i64: 2, 2, 1>, scalar_prefetch = 0 : i64, scratch_operands = 5 : i64, tpu.core_type = #tpu.core_type<tc>, window_params = [{transform_indices = @transform_0, window_bounds = array<i64: 4>}, {transform_indices = @transform_1, window_bounds = array<i64: 4>}, {transform_indices = @transform_2, window_bounds = array<i64: 396>}, {transform_indices = @transform_3, window_bounds = array<i64: 1, 3, 8, 16>}, {transform_indices = @transform_4, window_bounds = array<i64: 1, 1, 8, 16>}]} {
    %0 = tpu.iota {dimensions = array<i32: 0>} : vector<8x16xi32>
    %c8_i32 = arith.constant 8 : i32
    %1 = arith.muli %arg1, %c8_i32 : i32
    %2 = vector.broadcast %1 : i32 to vector<8x16xi32>
    %3 = arith.addi %0, %2 : vector<8x16xi32>
    %4 = tpu.iota {dimensions = array<i32: 1>} : vector<8x16xi32>
    %c16_i32 = arith.constant 16 : i32
    %5 = arith.muli %arg2, %c16_i32 : i32
    %6 = vector.broadcast %5 : i32 to vector<8x16xi32>
    %7 = arith.addi %4, %6 : vector<8x16xi32>
    %8 = arith.sitofp %7 : vector<8x16xi32> to vector<8x16xf32>
    %cst = arith.constant 5.000000e-01 : f32
    %9 = vector.broadcast %cst : f32 to vector<8x16xf32>
    %10 = arith.addf %8, %9 : vector<8x16xf32>
    %cst_0 = arith.constant 1.250000e-01 : f32
    %11 = vector.broadcast %cst_0 : f32 to vector<8x16xf32>
    %12 = arith.mulf %10, %11 : vector<8x16xf32>
    %cst_1 = arith.constant 1.000000e+00 : f32
    %13 = vector.broadcast %cst_1 : f32 to vector<8x16xf32>
    %14 = arith.subf %12, %13 : vector<8x16xf32>
    %15 = arith.sitofp %3 : vector<8x16xi32> to vector<8x16xf32>
    %cst_2 = arith.constant 5.000000e-01 : f32
    %16 = vector.broadcast %cst_2 : f32 to vector<8x16xf32>
    %17 = arith.addf %15, %16 : vector<8x16xf32>
    %cst_3 = arith.constant 1.250000e-01 : f32
    %18 = vector.broadcast %cst_3 : f32 to vector<8x16xf32>
    %19 = arith.mulf %17, %18 : vector<8x16xf32>
    %cst_4 = arith.constant 1.000000e+00 : f32
    %20 = vector.broadcast %cst_4 : f32 to vector<8x16xf32>
    %21 = arith.subf %20, %19 : vector<8x16xf32>
    %cst_5 = arith.constant 0xFF800000 : f32
    %22 = vector.broadcast %cst_5 : f32 to vector<8x16xf32>
    %c0 = arith.constant 0 : index
    %c0_6 = arith.constant 0 : index
    %23 = vector.load %arg8[%c0, %c0_6] : memref<8x16xf32, #tpu.memory_space<vmem>>, vector<8x16xf32>
    tpu.vector_store %arg8[%c0, %c0_6], %22 {strides = array<i32>} : memref<8x16xf32, #tpu.memory_space<vmem>>, vector<8x16xf32>,
    %cst_7 = arith.constant 0.000000e+00 : f32
    %24 = vector.broadcast %cst_7 : f32 to vector<8x16xf32>
    %c0_8 = arith.constant 0 : index
    %c0_9 = arith.constant 0 : index
    %25 = vector.load %arg9[%c0_8, %c0_9] : memref<8x16xf32, #tpu.memory_space<vmem>>, vector<8x16xf32>
    tpu.vector_store %arg9[%c0_8, %c0_9], %24 {strides = array<i32>} : memref<8x16xf32, #tpu.memory_space<vmem>>, vector<8x16xf32>,
    %cst_10 = arith.constant 0.000000e+00 : f32
    %26 = vector.broadcast %cst_10 : f32 to vector<8x16xf32>
    %c0_11 = arith.constant 0 : index
    %c0_12 = arith.constant 0 : index
    %27 = vector.load %arg10[%c0_11, %c0_12] : memref<8x16xf32, #tpu.memory_space<vmem>>, vector<8x16xf32>
    tpu.vector_store %arg10[%c0_11, %c0_12], %26 {strides = array<i32>} : memref<8x16xf32, #tpu.memory_space<vmem>>, vector<8x16xf32>,
    %cst_13 = arith.constant 0.000000e+00 : f32
    %28 = vector.broadcast %cst_13 : f32 to vector<8x16xf32>
    %c0_14 = arith.constant 0 : index
    %c0_15 = arith.constant 0 : index
    %29 = vector.load %arg11[%c0_14, %c0_15] : memref<8x16xf32, #tpu.memory_space<vmem>>, vector<8x16xf32>
    tpu.vector_store %arg11[%c0_14, %c0_15], %28 {strides = array<i32>} : memref<8x16xf32, #tpu.memory_space<vmem>>, vector<8x16xf32>,
    %cst_16 = arith.constant 1.000000e+00 : f32
    %30 = vector.broadcast %cst_16 : f32 to vector<8x16xf32>
    %c0_17 = arith.constant 0 : index
    %c0_18 = arith.constant 0 : index
    %31 = vector.load %arg12[%c0_17, %c0_18] : memref<8x16xf32, #tpu.memory_space<vmem>>, vector<8x16xf32>
    tpu.vector_store %arg12[%c0_17, %c0_18], %30 {strides = array<i32>} : memref<8x16xf32, #tpu.memory_space<vmem>>, vector<8x16xf32>,
    %c198_i32 = arith.constant 198 : i32
    %32 = arith.muli %arg0, %c198_i32 : i32
    %c2_i32 = arith.constant 2 : i32
    %33 = arith.muli %arg0, %c2_i32 : i32
    %34 = arith.addi %33, %arg1 : i32
    %35 = arith.index_cast %34 : i32 to index
    %36 = memref.load %arg3[%35] : memref<4xi32, #tpu.memory_space<smem>>
    %37 = arith.index_cast %34 : i32 to index
    %38 = memref.load %arg4[%37] : memref<4xi32, #tpu.memory_space<smem>>
    %c0_i32 = arith.constant 0 : i32
    %39 = arith.subi %38, %c0_i32 : i32
    %c1_i32 = arith.constant 1 : i32
    %c1_i32_19 = arith.constant 1 : i32
    %40 = arith.subi %c1_i32, %c1_i32_19 : i32
    %41 = arith.addi %39, %40 : i32
    %c1_i32_20 = arith.constant 1 : i32
    %42 = arith.divsi %41, %c1_i32_20 : i32
    %c1_i32_21 = arith.constant 1 : i32
    %c0_i32_22 = arith.constant 0 : i32
    %cst_23 = arith.constant -7.000000e+03 : f32
    %c0_i32_24 = arith.constant 0 : i32
    %43 = arith.subi %42, %c0_i32_24 : i32
    %44 = arith.addi %c0_i32_24, %43 : i32
    %c1_i32_25 = arith.constant 1 : i32
    scf.for %arg13 = %c0_i32_24 to %44 step %c1_i32_25  : i32 {
      %63 = arith.muli %arg13, %c1_i32_21 : i32
      %64 = arith.addi %c0_i32_22, %63 : i32
      %65 = arith.addi %32, %36 : i32
      %66 = arith.addi %65, %64 : i32
      %c0_i32_49 = arith.constant 0 : i32
      %67 = arith.addi %66, %c0_i32_49 : i32
      %68 = arith.index_cast %67 : i32 to index
      %69 = memref.load %arg5[%68] : memref<396xf32, #tpu.memory_space<smem>>
      %70 = vector.broadcast %69 : f32 to vector<8x16xf32>
      %71 = arith.mulf %70, %14 : vector<8x16xf32>
      %c6_i32 = arith.constant 6 : i32
      %72 = arith.addi %66, %c6_i32 : i32
      %73 = arith.index_cast %72 : i32 to index
      %74 = memref.load %arg5[%73] : memref<396xf32, #tpu.memory_space<smem>>
      %75 = vector.broadcast %74 : f32 to vector<8x16xf32>
      %76 = arith.mulf %75, %21 : vector<8x16xf32>
      %77 = arith.addf %71, %76 : vector<8x16xf32>
      %c12_i32 = arith.constant 12 : i32
      %78 = arith.addi %66, %c12_i32 : i32
      %79 = arith.index_cast %78 : i32 to index
      %80 = memref.load %arg5[%79] : memref<396xf32, #tpu.memory_space<smem>>
      %81 = vector.broadcast %80 : f32 to vector<8x16xf32>
      %82 = arith.addf %77, %81 : vector<8x16xf32>
      %c18_i32 = arith.constant 18 : i32
      %83 = arith.addi %66, %c18_i32 : i32
      %84 = arith.index_cast %83 : i32 to index
      %85 = memref.load %arg5[%84] : memref<396xf32, #tpu.memory_space<smem>>
      %86 = vector.broadcast %85 : f32 to vector<8x16xf32>
      %87 = arith.mulf %86, %14 : vector<8x16xf32>
      %c24_i32 = arith.constant 24 : i32
      %88 = arith.addi %66, %c24_i32 : i32
      %89 = arith.index_cast %88 : i32 to index
      %90 = memref.load %arg5[%89] : memref<396xf32, #tpu.memory_space<smem>>
      %91 = vector.broadcast %90 : f32 to vector<8x16xf32>
      %92 = arith.mulf %91, %21 : vector<8x16xf32>
      %93 = arith.addf %87, %92 : vector<8x16xf32>
      %c30_i32 = arith.constant 30 : i32
      %94 = arith.addi %66, %c30_i32 : i32
      %95 = arith.index_cast %94 : i32 to index
      %96 = memref.load %arg5[%95] : memref<396xf32, #tpu.memory_space<smem>>
      %97 = vector.broadcast %96 : f32 to vector<8x16xf32>
      %98 = arith.addf %93, %97 : vector<8x16xf32>
      %cst_50 = arith.constant 1.000000e+00 : f32
      %99 = vector.broadcast %cst_50 : f32 to vector<8x16xf32>
      %100 = arith.subf %99, %82 : vector<8x16xf32>
      %101 = arith.subf %100, %98 : vector<8x16xf32>
      %cst_51 = arith.constant 0.000000e+00 : f32
      %102 = vector.broadcast %cst_51 : f32 to vector<8x16xf32>
      %103 = arith.cmpf oge, %82, %102 : vector<8x16xf32>
      %cst_52 = arith.constant 0.000000e+00 : f32
      %104 = vector.broadcast %cst_52 : f32 to vector<8x16xf32>
      %105 = arith.cmpf oge, %98, %104 : vector<8x16xf32>
      %106 = arith.andi %103, %105 : vector<8x16xi1>
      %cst_53 = arith.constant 0.000000e+00 : f32
      %107 = vector.broadcast %cst_53 : f32 to vector<8x16xf32>
      %108 = arith.cmpf oge, %101, %107 : vector<8x16xf32>
      %109 = arith.andi %106, %108 : vector<8x16xi1>
      %c36_i32 = arith.constant 36 : i32
      %110 = arith.addi %66, %c36_i32 : i32
      %111 = arith.index_cast %110 : i32 to index
      %112 = memref.load %arg5[%111] : memref<396xf32, #tpu.memory_space<smem>>
      %113 = vector.broadcast %112 : f32 to vector<8x16xf32>
      %114 = arith.mulf %82, %113 : vector<8x16xf32>
      %c42_i32 = arith.constant 42 : i32
      %115 = arith.addi %66, %c42_i32 : i32
      %116 = arith.index_cast %115 : i32 to index
      %117 = memref.load %arg5[%116] : memref<396xf32, #tpu.memory_space<smem>>
      %118 = vector.broadcast %117 : f32 to vector<8x16xf32>
      %119 = arith.mulf %98, %118 : vector<8x16xf32>
      %120 = arith.addf %114, %119 : vector<8x16xf32>
      %c48_i32 = arith.constant 48 : i32
      %121 = arith.addi %66, %c48_i32 : i32
      %122 = arith.index_cast %121 : i32 to index
      %123 = memref.load %arg5[%122] : memref<396xf32, #tpu.memory_space<smem>>
      %124 = vector.broadcast %123 : f32 to vector<8x16xf32>
      %125 = arith.addf %120, %124 : vector<8x16xf32>
      %c0_54 = arith.constant 0 : index
      %c0_55 = arith.constant 0 : index
      %126 = vector.load %arg8[%c0_54, %c0_55] : memref<8x16xf32, #tpu.memory_space<vmem>>, vector<8x16xf32>
      %127 = arith.cmpf ogt, %125, %126 : vector<8x16xf32>
      %128 = arith.andi %109, %127 : vector<8x16xi1>
      %129 = arith.select %128, %125, %126 : vector<8x16xi1>, vector<8x16xf32>
      %c0_56 = arith.constant 0 : index
      %c0_57 = arith.constant 0 : index
      %130 = vector.load %arg8[%c0_56, %c0_57] : memref<8x16xf32, #tpu.memory_space<vmem>>, vector<8x16xf32>
      tpu.vector_store %arg8[%c0_56, %c0_57], %129 {strides = array<i32>} : memref<8x16xf32, #tpu.memory_space<vmem>>, vector<8x16xf32>,
      %c54_i32 = arith.constant 54 : i32
      %131 = arith.addi %66, %c54_i32 : i32
      %132 = arith.index_cast %131 : i32 to index
      %133 = memref.load %arg5[%132] : memref<396xf32, #tpu.memory_space<smem>>
      %134 = vector.broadcast %133 : f32 to vector<8x16xf32>
      %135 = arith.mulf %82, %134 : vector<8x16xf32>
      %c60_i32 = arith.constant 60 : i32
      %136 = arith.addi %66, %c60_i32 : i32
      %137 = arith.index_cast %136 : i32 to index
      %138 = memref.load %arg5[%137] : memref<396xf32, #tpu.memory_space<smem>>
      %139 = vector.broadcast %138 : f32 to vector<8x16xf32>
      %140 = arith.mulf %98, %139 : vector<8x16xf32>
      %141 = arith.addf %135, %140 : vector<8x16xf32>
      %c66_i32 = arith.constant 66 : i32
      %142 = arith.addi %66, %c66_i32 : i32
      %143 = arith.index_cast %142 : i32 to index
      %144 = memref.load %arg5[%143] : memref<396xf32, #tpu.memory_space<smem>>
      %145 = vector.broadcast %144 : f32 to vector<8x16xf32>
      %146 = arith.addf %141, %145 : vector<8x16xf32>
      %c0_58 = arith.constant 0 : index
      %c0_59 = arith.constant 0 : index
      %147 = vector.load %arg9[%c0_58, %c0_59] : memref<8x16xf32, #tpu.memory_space<vmem>>, vector<8x16xf32>
      %148 = arith.select %128, %146, %147 : vector<8x16xi1>, vector<8x16xf32>
      %c0_60 = arith.constant 0 : index
      %c0_61 = arith.constant 0 : index
      %149 = vector.load %arg9[%c0_60, %c0_61] : memref<8x16xf32, #tpu.memory_space<vmem>>, vector<8x16xf32>
      tpu.vector_store %arg9[%c0_60, %c0_61], %148 {strides = array<i32>} : memref<8x16xf32, #tpu.memory_space<vmem>>, vector<8x16xf32>,
      %c72_i32 = arith.constant 72 : i32
      %150 = arith.addi %66, %c72_i32 : i32
      %151 = arith.index_cast %150 : i32 to index
      %152 = memref.load %arg5[%151] : memref<396xf32, #tpu.memory_space<smem>>
      %153 = vector.broadcast %152 : f32 to vector<8x16xf32>
      %154 = arith.mulf %82, %153 : vector<8x16xf32>
      %c78_i32 = arith.constant 78 : i32
      %155 = arith.addi %66, %c78_i32 : i32
      %156 = arith.index_cast %155 : i32 to index
      %157 = memref.load %arg5[%156] : memref<396xf32, #tpu.memory_space<smem>>
      %158 = vector.broadcast %157 : f32 to vector<8x16xf32>
      %159 = arith.mulf %98, %158 : vector<8x16xf32>
      %160 = arith.addf %154, %159 : vector<8x16xf32>
      %c84_i32 = arith.constant 84 : i32
      %161 = arith.addi %66, %c84_i32 : i32
      %162 = arith.index_cast %161 : i32 to index
      %163 = memref.load %arg5[%162] : memref<396xf32, #tpu.memory_space<smem>>
      %164 = vector.broadcast %163 : f32 to vector<8x16xf32>
      %165 = arith.addf %160, %164 : vector<8x16xf32>
      %c0_62 = arith.constant 0 : index
      %c0_63 = arith.constant 0 : index
      %166 = vector.load %arg10[%c0_62, %c0_63] : memref<8x16xf32, #tpu.memory_space<vmem>>, vector<8x16xf32>
      %167 = arith.select %128, %165, %166 : vector<8x16xi1>, vector<8x16xf32>
      %c0_64 = arith.constant 0 : index
      %c0_65 = arith.constant 0 : index
      %168 = vector.load %arg10[%c0_64, %c0_65] : memref<8x16xf32, #tpu.memory_space<vmem>>, vector<8x16xf32>
      tpu.vector_store %arg10[%c0_64, %c0_65], %167 {strides = array<i32>} : memref<8x16xf32, #tpu.memory_space<vmem>>, vector<8x16xf32>,
      %c90_i32 = arith.constant 90 : i32
      %169 = arith.addi %66, %c90_i32 : i32
      %170 = arith.index_cast %169 : i32 to index
      %171 = memref.load %arg5[%170] : memref<396xf32, #tpu.memory_space<smem>>
      %172 = vector.broadcast %171 : f32 to vector<8x16xf32>
      %173 = arith.mulf %82, %172 : vector<8x16xf32>
      %c96_i32 = arith.constant 96 : i32
      %174 = arith.addi %66, %c96_i32 : i32
      %175 = arith.index_cast %174 : i32 to index
      %176 = memref.load %arg5[%175] : memref<396xf32, #tpu.memory_space<smem>>
      %177 = vector.broadcast %176 : f32 to vector<8x16xf32>
      %178 = arith.mulf %98, %177 : vector<8x16xf32>
      %179 = arith.addf %173, %178 : vector<8x16xf32>
      %c102_i32 = arith.constant 102 : i32
      %180 = arith.addi %66, %c102_i32 : i32
      %181 = arith.index_cast %180 : i32 to index
      %182 = memref.load %arg5[%181] : memref<396xf32, #tpu.memory_space<smem>>
      %183 = vector.broadcast %182 : f32 to vector<8x16xf32>
      %184 = arith.addf %179, %183 : vector<8x16xf32>
      %c0_66 = arith.constant 0 : index
      %c0_67 = arith.constant 0 : index
      %185 = vector.load %arg11[%c0_66, %c0_67] : memref<8x16xf32, #tpu.memory_space<vmem>>, vector<8x16xf32>
      %186 = arith.select %128, %184, %185 : vector<8x16xi1>, vector<8x16xf32>
      %c0_68 = arith.constant 0 : index
      %c0_69 = arith.constant 0 : index
      %187 = vector.load %arg11[%c0_68, %c0_69] : memref<8x16xf32, #tpu.memory_space<vmem>>, vector<8x16xf32>
      tpu.vector_store %arg11[%c0_68, %c0_69], %186 {strides = array<i32>} : memref<8x16xf32, #tpu.memory_space<vmem>>, vector<8x16xf32>,
      %c108_i32 = arith.constant 108 : i32
      %188 = arith.addi %66, %c108_i32 : i32
      %189 = arith.index_cast %188 : i32 to index
      %190 = memref.load %arg5[%189] : memref<396xf32, #tpu.memory_space<smem>>
      %c114_i32 = arith.constant 114 : i32
      %191 = arith.addi %66, %c114_i32 : i32
      %192 = arith.index_cast %191 : i32 to index
      %193 = memref.load %arg5[%192] : memref<396xf32, #tpu.memory_space<smem>>
      %c120_i32 = arith.constant 120 : i32
      %194 = arith.addi %66, %c120_i32 : i32
      %195 = arith.index_cast %194 : i32 to index
      %196 = memref.load %arg5[%195] : memref<396xf32, #tpu.memory_space<smem>>
      %c126_i32 = arith.constant 126 : i32
      %197 = arith.addi %66, %c126_i32 : i32
      %198 = arith.index_cast %197 : i32 to index
      %199 = memref.load %arg5[%198] : memref<396xf32, #tpu.memory_space<smem>>
      %c132_i32 = arith.constant 132 : i32
      %200 = arith.addi %66, %c132_i32 : i32
      %201 = arith.index_cast %200 : i32 to index
      %202 = memref.load %arg5[%201] : memref<396xf32, #tpu.memory_space<smem>>
      %203 = vector.broadcast %190 : f32 to vector<8x16xf32>
      %204 = arith.subf %14, %203 : vector<8x16xf32>
      %205 = vector.broadcast %193 : f32 to vector<8x16xf32>
      %206 = arith.subf %21, %205 : vector<8x16xf32>
      %207 = vector.broadcast %196 : f32 to vector<8x16xf32>
      %208 = arith.mulf %204, %207 : vector<8x16xf32>
      %209 = vector.broadcast %199 : f32 to vector<8x16xf32>
      %210 = arith.mulf %206, %209 : vector<8x16xf32>
      %211 = arith.addf %208, %210 : vector<8x16xf32>
      %212 = vector.broadcast %202 : f32 to vector<8x16xf32>
      %213 = arith.mulf %211, %212 : vector<8x16xf32>
      %cst_70 = arith.constant 0.000000e+00 : f32
      %cst_71 = arith.constant 1.000000e+00 : f32
      %214 = vector.broadcast %cst_70 : f32 to vector<8x16xf32>
      %215 = arith.maximumf %214, %213 : vector<8x16xf32>
      %216 = vector.broadcast %cst_71 : f32 to vector<8x16xf32>
      %217 = arith.minimumf %216, %215 : vector<8x16xf32>
      %218 = vector.broadcast %196 : f32 to vector<8x16xf32>
      %219 = arith.mulf %217, %218 : vector<8x16xf32>
      %220 = arith.subf %204, %219 : vector<8x16xf32>
      %221 = vector.broadcast %199 : f32 to vector<8x16xf32>
      %222 = arith.mulf %217, %221 : vector<8x16xf32>
      %223 = arith.subf %206, %222 : vector<8x16xf32>
      %224 = arith.mulf %220, %220 : vector<8x16xf32>
      %225 = arith.mulf %223, %223 : vector<8x16xf32>
      %226 = arith.addf %224, %225 : vector<8x16xf32>
      %c138_i32 = arith.constant 138 : i32
      %227 = arith.addi %66, %c138_i32 : i32
      %228 = arith.index_cast %227 : i32 to index
      %229 = memref.load %arg5[%228] : memref<396xf32, #tpu.memory_space<smem>>
      %c144_i32 = arith.constant 144 : i32
      %230 = arith.addi %66, %c144_i32 : i32
      %231 = arith.index_cast %230 : i32 to index
      %232 = memref.load %arg5[%231] : memref<396xf32, #tpu.memory_space<smem>>
      %c150_i32 = arith.constant 150 : i32
      %233 = arith.addi %66, %c150_i32 : i32
      %234 = arith.index_cast %233 : i32 to index
      %235 = memref.load %arg5[%234] : memref<396xf32, #tpu.memory_space<smem>>
      %c156_i32 = arith.constant 156 : i32
      %236 = arith.addi %66, %c156_i32 : i32
      %237 = arith.index_cast %236 : i32 to index
      %238 = memref.load %arg5[%237] : memref<396xf32, #tpu.memory_space<smem>>
      %c162_i32 = arith.constant 162 : i32
      %239 = arith.addi %66, %c162_i32 : i32
      %240 = arith.index_cast %239 : i32 to index
      %241 = memref.load %arg5[%240] : memref<396xf32, #tpu.memory_space<smem>>
      %242 = vector.broadcast %229 : f32 to vector<8x16xf32>
      %243 = arith.subf %14, %242 : vector<8x16xf32>
      %244 = vector.broadcast %232 : f32 to vector<8x16xf32>
      %245 = arith.subf %21, %244 : vector<8x16xf32>
      %246 = vector.broadcast %235 : f32 to vector<8x16xf32>
      %247 = arith.mulf %243, %246 : vector<8x16xf32>
      %248 = vector.broadcast %238 : f32 to vector<8x16xf32>
      %249 = arith.mulf %245, %248 : vector<8x16xf32>
      %250 = arith.addf %247, %249 : vector<8x16xf32>
      %251 = vector.broadcast %241 : f32 to vector<8x16xf32>
      %252 = arith.mulf %250, %251 : vector<8x16xf32>
      %cst_72 = arith.constant 0.000000e+00 : f32
      %cst_73 = arith.constant 1.000000e+00 : f32
      %253 = vector.broadcast %cst_72 : f32 to vector<8x16xf32>
      %254 = arith.maximumf %253, %252 : vector<8x16xf32>
      %255 = vector.broadcast %cst_73 : f32 to vector<8x16xf32>
      %256 = arith.minimumf %255, %254 : vector<8x16xf32>
      %257 = vector.broadcast %235 : f32 to vector<8x16xf32>
      %258 = arith.mulf %256, %257 : vector<8x16xf32>
      %259 = arith.subf %243, %258 : vector<8x16xf32>
      %260 = vector.broadcast %238 : f32 to vector<8x16xf32>
      %261 = arith.mulf %256, %260 : vector<8x16xf32>
      %262 = arith.subf %245, %261 : vector<8x16xf32>
      %263 = arith.mulf %259, %259 : vector<8x16xf32>
      %264 = arith.mulf %262, %262 : vector<8x16xf32>
      %265 = arith.addf %263, %264 : vector<8x16xf32>
      %c168_i32 = arith.constant 168 : i32
      %266 = arith.addi %66, %c168_i32 : i32
      %267 = arith.index_cast %266 : i32 to index
      %268 = memref.load %arg5[%267] : memref<396xf32, #tpu.memory_space<smem>>
      %c174_i32 = arith.constant 174 : i32
      %269 = arith.addi %66, %c174_i32 : i32
      %270 = arith.index_cast %269 : i32 to index
      %271 = memref.load %arg5[%270] : memref<396xf32, #tpu.memory_space<smem>>
      %c180_i32 = arith.constant 180 : i32
      %272 = arith.addi %66, %c180_i32 : i32
      %273 = arith.index_cast %272 : i32 to index
      %274 = memref.load %arg5[%273] : memref<396xf32, #tpu.memory_space<smem>>
      %c186_i32 = arith.constant 186 : i32
      %275 = arith.addi %66, %c186_i32 : i32
      %276 = arith.index_cast %275 : i32 to index
      %277 = memref.load %arg5[%276] : memref<396xf32, #tpu.memory_space<smem>>
      %c192_i32 = arith.constant 192 : i32
      %278 = arith.addi %66, %c192_i32 : i32
      %279 = arith.index_cast %278 : i32 to index
      %280 = memref.load %arg5[%279] : memref<396xf32, #tpu.memory_space<smem>>
      %281 = vector.broadcast %268 : f32 to vector<8x16xf32>
      %282 = arith.subf %14, %281 : vector<8x16xf32>
      %283 = vector.broadcast %271 : f32 to vector<8x16xf32>
      %284 = arith.subf %21, %283 : vector<8x16xf32>
      %285 = vector.broadcast %274 : f32 to vector<8x16xf32>
      %286 = arith.mulf %282, %285 : vector<8x16xf32>
      %287 = vector.broadcast %277 : f32 to vector<8x16xf32>
      %288 = arith.mulf %284, %287 : vector<8x16xf32>
      %289 = arith.addf %286, %288 : vector<8x16xf32>
      %290 = vector.broadcast %280 : f32 to vector<8x16xf32>
      %291 = arith.mulf %289, %290 : vector<8x16xf32>
      %cst_74 = arith.constant 0.000000e+00 : f32
      %cst_75 = arith.constant 1.000000e+00 : f32
      %292 = vector.broadcast %cst_74 : f32 to vector<8x16xf32>
      %293 = arith.maximumf %292, %291 : vector<8x16xf32>
      %294 = vector.broadcast %cst_75 : f32 to vector<8x16xf32>
      %295 = arith.minimumf %294, %293 : vector<8x16xf32>
      %296 = vector.broadcast %274 : f32 to vector<8x16xf32>
      %297 = arith.mulf %295, %296 : vector<8x16xf32>
      %298 = arith.subf %282, %297 : vector<8x16xf32>
      %299 = vector.broadcast %277 : f32 to vector<8x16xf32>
      %300 = arith.mulf %295, %299 : vector<8x16xf32>
      %301 = arith.subf %284, %300 : vector<8x16xf32>
      %302 = arith.mulf %298, %298 : vector<8x16xf32>
      %303 = arith.mulf %301, %301 : vector<8x16xf32>
      %304 = arith.addf %302, %303 : vector<8x16xf32>
      %305 = arith.minimumf %265, %304 : vector<8x16xf32>
      %306 = arith.minimumf %226, %305 : vector<8x16xf32>
      %307 = vector.broadcast %cst_23 : f32 to vector<8x16xf32>
      %308 = arith.mulf %306, %307 : vector<8x16xf32>
      %309 = math.exp %308 : vector<8x16xf32>
      %cst_76 = arith.constant 1.000000e+00 : f32
      %310 = vector.broadcast %cst_76 : f32 to vector<8x16xf32>
      %311 = arith.select %109, %310, %309 : vector<8x16xi1>, vector<8x16xf32>
      %c0_77 = arith.constant 0 : index
      %c0_78 = arith.constant 0 : index
      %312 = vector.load %arg12[%c0_77, %c0_78] : memref<8x16xf32, #tpu.memory_space<vmem>>, vector<8x16xf32>
      %cst_79 = arith.constant 1.000000e+00 : f32
      %313 = vector.broadcast %cst_79 : f32 to vector<8x16xf32>
      %314 = arith.subf %313, %311 : vector<8x16xf32>
      %315 = arith.mulf %312, %314 : vector<8x16xf32>
      %c0_80 = arith.constant 0 : index
      %c0_81 = arith.constant 0 : index
      %316 = vector.load %arg12[%c0_80, %c0_81] : memref<8x16xf32, #tpu.memory_space<vmem>>, vector<8x16xf32>
      tpu.vector_store %arg12[%c0_80, %c0_81], %315 {strides = array<i32>} : memref<8x16xf32, #tpu.memory_space<vmem>>, vector<8x16xf32>,
    }
    %c0_26 = arith.constant 0 : index
    %c0_27 = arith.constant 0 : index
    %45 = vector.load %arg9[%c0_26, %c0_27] : memref<8x16xf32, #tpu.memory_space<vmem>>, vector<8x16xf32>
    %c0_28 = arith.constant 0 : index
    %c0_29 = arith.constant 0 : index
    %c0_30 = arith.constant 0 : index
    %c0_31 = arith.constant 0 : index
    %46 = vector.load %arg6[%c0_28, %c0_29, %c0_30, %c0_31] : memref<1x3x8x16xf32, #tpu.memory_space<vmem>>, vector<1x1x8x16xf32>
    %47 = vector.shape_cast %46 : vector<1x1x8x16xf32> to vector<8x16xf32>
    %48 = vector.shape_cast %45 : vector<8x16xf32> to vector<1x1x8x16xf32>
    tpu.vector_store %arg6[%c0_28, %c0_29, %c0_30, %c0_31], %48 {strides = array<i32>} : memref<1x3x8x16xf32, #tpu.memory_space<vmem>>, vector<1x1x8x16xf32>,
    %c0_32 = arith.constant 0 : index
    %c0_33 = arith.constant 0 : index
    %49 = vector.load %arg10[%c0_32, %c0_33] : memref<8x16xf32, #tpu.memory_space<vmem>>, vector<8x16xf32>
    %c0_34 = arith.constant 0 : index
    %c1 = arith.constant 1 : index
    %c0_35 = arith.constant 0 : index
    %c0_36 = arith.constant 0 : index
    %50 = vector.load %arg6[%c0_34, %c1, %c0_35, %c0_36] : memref<1x3x8x16xf32, #tpu.memory_space<vmem>>, vector<1x1x8x16xf32>
    %51 = vector.shape_cast %50 : vector<1x1x8x16xf32> to vector<8x16xf32>
    %52 = vector.shape_cast %49 : vector<8x16xf32> to vector<1x1x8x16xf32>
    tpu.vector_store %arg6[%c0_34, %c1, %c0_35, %c0_36], %52 {strides = array<i32>} : memref<1x3x8x16xf32, #tpu.memory_space<vmem>>, vector<1x1x8x16xf32>,
    %c0_37 = arith.constant 0 : index
    %c0_38 = arith.constant 0 : index
    %53 = vector.load %arg11[%c0_37, %c0_38] : memref<8x16xf32, #tpu.memory_space<vmem>>, vector<8x16xf32>
    %c0_39 = arith.constant 0 : index
    %c2 = arith.constant 2 : index
    %c0_40 = arith.constant 0 : index
    %c0_41 = arith.constant 0 : index
    %54 = vector.load %arg6[%c0_39, %c2, %c0_40, %c0_41] : memref<1x3x8x16xf32, #tpu.memory_space<vmem>>, vector<1x1x8x16xf32>
    %55 = vector.shape_cast %54 : vector<1x1x8x16xf32> to vector<8x16xf32>
    %56 = vector.shape_cast %53 : vector<8x16xf32> to vector<1x1x8x16xf32>
    tpu.vector_store %arg6[%c0_39, %c2, %c0_40, %c0_41], %56 {strides = array<i32>} : memref<1x3x8x16xf32, #tpu.memory_space<vmem>>, vector<1x1x8x16xf32>,
    %c0_42 = arith.constant 0 : index
    %c0_43 = arith.constant 0 : index
    %57 = vector.load %arg12[%c0_42, %c0_43] : memref<8x16xf32, #tpu.memory_space<vmem>>, vector<8x16xf32>
    %cst_44 = arith.constant 1.000000e+00 : f32
    %58 = vector.broadcast %cst_44 : f32 to vector<8x16xf32>
    %59 = arith.subf %58, %57 : vector<8x16xf32>
    %c0_45 = arith.constant 0 : index
    %c0_46 = arith.constant 0 : index
    %c0_47 = arith.constant 0 : index
    %c0_48 = arith.constant 0 : index
    %60 = vector.load %arg7[%c0_45, %c0_46, %c0_47, %c0_48] : memref<1x1x8x16xf32, #tpu.memory_space<vmem>>, vector<1x1x8x16xf32>
    %61 = vector.shape_cast %60 : vector<1x1x8x16xf32> to vector<8x16xf32>
    %62 = vector.shape_cast %59 : vector<8x16xf32> to vector<1x1x8x16xf32>
    tpu.vector_store %arg7[%c0_45, %c0_46, %c0_47, %c0_48], %62 {strides = array<i32>} : memref<1x1x8x16xf32, #tpu.memory_space<vmem>>, vector<1x1x8x16xf32>,
    return
  }
  func.func @transform_0(%arg0: i32, %arg1: i32, %arg2: i32) -> i32 {
    %c0_i32 = arith.constant 0 : i32
    %c0_i32_0 = arith.constant 0 : i32
    return %c0_i32 : i32
  }
  func.func @transform_1(%arg0: i32, %arg1: i32, %arg2: i32) -> i32 {
    %c0_i32 = arith.constant 0 : i32
    %c0_i32_0 = arith.constant 0 : i32
    return %c0_i32 : i32
  }
  func.func @transform_2(%arg0: i32, %arg1: i32, %arg2: i32) -> i32 {
    %c0_i32 = arith.constant 0 : i32
    %c0_i32_0 = arith.constant 0 : i32
    return %c0_i32 : i32
  }
  func.func @transform_3(%arg0: i32, %arg1: i32, %arg2: i32) -> (i32, i32, i32, i32) {
    %c0_i32 = arith.constant 0 : i32
    %c0_i32_0 = arith.constant 0 : i32
    return %arg0, %c0_i32, %arg1, %arg2 : i32, i32, i32, i32
  }
  func.func @transform_4(%arg0: i32, %arg1: i32, %arg2: i32) -> (i32, i32, i32, i32) {
    %c0_i32 = arith.constant 0 : i32
    %c0_i32_0 = arith.constant 0 : i32
    return %arg0, %c0_i32, %arg1, %arg2 : i32, i32, i32, i32
  }
}

</mosaic_0001>

<llo_original>
// kernel: custom-call.10
$region0: #{custom-call.10}
  %s0 = inlined_call_operand.vmem [shape: u32[2,2], index: 0, kind: output, shape index: {}]

// kernel: squeeze.15
$region0: #{squeeze.15}
  %s0 = inlined_call_operand.vmem [shape: f32[4], index: 0, kind: input, shape index: {}]
  %s1 = inlined_call_operand.vmem [shape: f32[2,2], index: 1, kind: output, shape index: {}]
  $region1: #{squeeze.15} parent=0
    #allocation0 [shape = 'u8[4096]{0}', space=vmem, size = 0x1000, scoped, tag = 'scoped mem for output reshape']
    #allocation1 [shape = 'u8[4096]{0}', space=vmem, size = 0x1000, scoped, tag = 'scoped mem for input reshape']
    %s3 = sshllo.u32 0, 1
    %v4 = vld [vmem:[%s0] sm:%s3]
    %5 = vst [vmem:[#allocation1] sm:%s3] %v4
    %v6 = vld [vmem:[#allocation1] sm:$0x1]
    %vm7 = vcmask 15360
    %8 = vst.msk [vmem:[#allocation0] sm:$0x1] %vm7, %v6
    %v9 = vld [vmem:[#allocation1] sm:$0x1]
    %10 = vrot.lane.b32.xlu0 %v9, 126
    %v11 = vpop.permute.xlu0 %10
    %vm12 = vcmask 15360
    %s13 = scalar_lea.vmem [#allocation0], 1
    %14 = vst.msk [vmem:[%s13] sm:$0x1] %vm12, %v11
    %s16 = sshllo.u32 0, 2
    %v18 = vld [vmem:[#allocation0] sm:%s16]
    %s19 = sshllo.u32 0, 2
    %20 = vst [vmem:[%s1] sm:%s19] %v18

// kernel: _rasterize.1
$region0: #{_rasterize.1}
  #allocation0 [shape = 'u32[]', space=smem, size = 0x4, offset = 0x4, fixed_abs, tag = 'smem constant byte address 0x4 - core index']
  #allocation1 [shape = 'u32[144,128]{1,0:T(1,128)}', space=vmem, size = 0x12000, scoped, tag = 'internal scratch']
  #allocation2 [shape = 'f32[8,16]{1,0:T(8,128)}', space=vmem, size = 0x1000, scoped, tag = 'scratch operand']
  #allocation3 [shape = 'f32[8,16]{1,0:T(8,128)}', space=vmem, size = 0x1000, scoped, tag = 'scratch operand']
  #allocation4 [shape = 'f32[8,16]{1,0:T(8,128)}', space=vmem, size = 0x1000, scoped, tag = 'scratch operand']
  #allocation5 [shape = 'f32[8,16]{1,0:T(8,128)}', space=vmem, size = 0x1000, scoped, tag = 'scratch operand']
  #allocation6 [shape = 'f32[8,16]{1,0:T(8,128)}', space=vmem, size = 0x1000, scoped, tag = 'scratch operand']
  %s0 = inlined_call_operand.vmem [shape: s32[4], index: 0, kind: input, shape index: {}]
  %s1 = inlined_call_operand.vmem [shape: s32[4], index: 1, kind: input, shape index: {}]
  %s2 = inlined_call_operand.vmem [shape: f32[396], index: 2, kind: input, shape index: {}]
  %s3 = inlined_call_operand.hbm [shape: f32[2,3,16,16], index: 3, kind: output, shape index: {0}]
  %s4 = inlined_call_operand.hbm [shape: f32[2,1,16,16], index: 4, kind: output, shape index: {1}]
  %5 = xla_tuple %s3, %s4
  %s6 = sld [smem:[#allocation0]]
  $region72: #{_rasterize.1} parent=0
    _
  %s8 = ssub.s32 1, %s6
  %s9 = scalar_select 0, %s8, %s6
  $region1: #{_rasterize.1} parent=0
    #allocation7 [shape = 'u8[512]{0}', space=smem, size = 0x200, scoped, tag = 'input window, operand 0, single buffered']
    #allocation8 [shape = 's32[2]{0}', space=sflag, size = 0x8, scoped, tag = 'scoped memory for _rasterize.1']
    #allocation9 [shape = 's32[2]{0}', space=sflag, size = 0x8, scoped, tag = 'scoped memory for _rasterize.1']
    #allocation10 [shape = 'u8[512]{0}', space=smem, size = 0x200, scoped, tag = 'input window, operand 1, single buffered']
    #allocation11 [shape = 's32[1]{0}', space=sflag, size = 0x4, scoped, tag = 'scoped memory for _rasterize.1']
    #allocation12 [shape = 'u8[2048]{0}', space=smem, size = 0x800, scoped, tag = 'input window, operand 2, single buffered']
    #allocation13 [shape = 'u8[24576]{0}', space=vmem, size = 0x6000, scoped, tag = 'output window, operand 0']
    #allocation14 [shape = 'u8[8192]{0}', space=vmem, size = 0x2000, scoped, tag = 'output window, operand 1']
    #allocation15 [shape = 's32[2]{0}', space=sflag, size = 0x8, scoped, tag = 'scoped memory for _rasterize.1']
    %10 = vsyncpa [#allocation9], 0
    %11 = vsyncpa [#allocation11], 0
    %12 = vsyncpa [#allocation8], 0
    %s13 = scalar_lea.sflag [#allocation8], 1
    %14 = vsyncpa %s13, 0
    %15 = vsyncpa [#allocation15], 0
    %s16 = scalar_lea.sflag [#allocation15], 1
    %17 = vsyncpa %s16, 0
    loop: start=0, step=1, limit=6
    $region2: #{_rasterize.1} parent=1 // loop_pre_header
      _
    $region3: #{_rasterize.1} parent=1 // loop_header
      %s19 = sphi 0, %s23
      %p20 = scmp.ge.s32.totalorder %s19, 6
      %s26 = sphi 0, %s45
      %s27 = sphi 0, %s41
      %s28 = sphi 0, %s37
      %s29 = sphi 0, %s26
      %s30 = sphi 0, %s27
      %s31 = sphi 0, %s28
      %s32 = sphi 0, %s29
      %s33 = sphi 0, %s30
      %s34 = sphi 0, %s31
      %s46 = sphi 0, %s46
      %s48 = sphi 0, %s46
      %s49 = sphi 0, %s48
      %s63 = sphi 0, %s49
      %s67 = sphi 0, %s67
      %s69 = sphi 0, %s67
      %s70 = sphi 0, %s69
      %s84 = sphi 0, %s70
      %s88 = sphi 0, %s88
      %s90 = sphi 0, %s88
      %s91 = sphi 0, %s90
      %s105 = sphi 0, %s91
      %s115 = sphi 0, %s117
      %s118 = sphi 0, %s115
      %s119 = sphi 0, %s118
      %s135 = sphi 0, %s119
      %s145 = sphi 0, %s147
      %s148 = sphi 0, %s145
      %s149 = sphi 0, %s148
      %s165 = sphi 0, %s149
    $region4: #{_rasterize.1} parent=1 // loop_header_branch
      %22 = sbr.rel (%p20) target = $region8
    $region5: #{_rasterize.1} parent=1 // loop_body
      %s24 = ssub.s32 %s19, 1
      %s25 = ssub.s32 %s19, 2
      %s35 = sadd.s32 1, %s28
      %p36 = scmp.ge.s32.totalorder %s35, 1
      %s37 = scalar_select %p36, 0, %s35
      %s38 = sadd.s32 1, %s27
      %s39 = scalar_select %p36, %s38, %s27
      %p40 = scmp.ge.s32.totalorder %s39, 2
      %s41 = scalar_select %p40, 0, %s39
      %s42 = sadd.s32 1, %s26
      %s43 = scalar_select %p40, %s42, %s26
      %p44 = scmp.ge.s32.totalorder %s43, 2
      %s45 = scalar_select %p44, 0, %s43
      %s47 = sadd.s32 %s46, 1
      %p50 = scmp.eq.s32.totalorder %s19, 3
      %p51 = scmp.ne.s32.totalorder %s46, %s48
      %p52 = scmp.eq.s32.totalorder %s19, 0
      %p53 = por %p51, %p52
      %p54 = scmp.ne.s32.totalorder %s46, %s48
      %p55 = scmp.eq.s32.totalorder %s24, 3
      %p56 = por %p54, %p55
      %p57 = scmp.ne.s32.totalorder %s48, %s49
      %p58 = scmp.eq.s32.totalorder %s24, 0
      %p59 = por %p57, %p58
      %p60 = scmp.ne.s32.totalorder %s48, %s49
      %p61 = scmp.eq.s32.totalorder %s25, 3
      %p62 = por %p60, %p61
      %p64 = scmp.ne.s32.totalorder %s49, %s63
      %p65 = scmp.eq.s32.totalorder %s25, 0
      %p66 = por %p64, %p65
      %s68 = sadd.s32 %s67, 1
      %p71 = scmp.eq.s32.totalorder %s19, 3
      %p72 = scmp.ne.s32.totalorder %s67, %s69
      %p73 = scmp.eq.s32.totalorder %s19, 0
      %p74 = por %p72, %p73
      %p75 = scmp.ne.s32.totalorder %s67, %s69
      %p76 = scmp.eq.s32.totalorder %s24, 3
      %p77 = por %p75, %p76
      %p78 = scmp.ne.s32.totalorder %s69, %s70
      %p79 = scmp.eq.s32.totalorder %s24, 0
      %p80 = por %p78, %p79
      %p81 = scmp.ne.s32.totalorder %s69, %s70
      %p82 = scmp.eq.s32.totalorder %s25, 3
      %p83 = por %p81, %p82
      %p85 = scmp.ne.s32.totalorder %s70, %s84
      %p86 = scmp.eq.s32.totalorder %s25, 0
      %p87 = por %p85, %p86
      %s89 = sadd.s32 %s88, 1
      %p92 = scmp.eq.s32.totalorder %s19, 3
      %p93 = scmp.ne.s32.totalorder %s88, %s90
      %p94 = scmp.eq.s32.totalorder %s19, 0
      %p95 = por %p93, %p94
      %p96 = scmp.ne.s32.totalorder %s88, %s90
      %p97 = scmp.eq.s32.totalorder %s24, 3
      %p98 = por %p96, %p97
      %p99 = scmp.ne.s32.totalorder %s90, %s91
      %p100 = scmp.eq.s32.totalorder %s24, 0
      %p101 = por %p99, %p100
      %p102 = scmp.ne.s32.totalorder %s90, %s91
      %p103 = scmp.eq.s32.totalorder %s25, 3
      %p104 = por %p102, %p103
      %p106 = scmp.ne.s32.totalorder %s91, %s105
      %p107 = scmp.eq.s32.totalorder %s25, 0
      %p108 = por %p106, %p107
      %s109 = ssub.s32 %s26, %s45
      %s110 = ssub.s32 %s27, %s41
      %s111 = sor.u32 %s109, %s110
      %s112 = ssub.s32 %s28, %s37
      %s113 = sor.u32 %s111, %s112
      %p114 = scmp.eq.s32.totalorder %s113, 0
      %s116 = sadd.s32 %s115, 1
      %s117 = scalar_select %p114, %s115, %s116
      %p120 = pneg %p114
      %p121 = scmp.eq.s32.totalorder %s19, 3
      %p122 = por %p120, %p121
      %p123 = scmp.ne.s32.totalorder %s115, %s118
      %p124 = scmp.eq.s32.totalorder %s19, 0
      %p125 = por %p123, %p124
      %p126 = scmp.ne.s32.totalorder %s115, %s118
      %p127 = scmp.eq.s32.totalorder %s24, 3
      %p128 = por %p126, %p127
      %p129 = scmp.ne.s32.totalorder %s118, %s119
      %p130 = scmp.eq.s32.totalorder %s24, 0
      %p131 = por %p129, %p130
      %p132 = scmp.ne.s32.totalorder %s118, %s119
      %p133 = scmp.eq.s32.totalorder %s25, 3
      %p134 = por %p132, %p133
      %p136 = scmp.ne.s32.totalorder %s119, %s135
      %p137 = scmp.eq.s32.totalorder %s25, 0
      %p138 = por %p136, %p137
      %s139 = ssub.s32 %s26, %s45
      %s140 = ssub.s32 %s27, %s41
      %s141 = sor.u32 %s139, %s140
      %s142 = ssub.s32 %s28, %s37
      %s143 = sor.u32 %s141, %s142
      %p144 = scmp.eq.s32.totalorder %s143, 0
      %s146 = sadd.s32 %s145, 1
      %s147 = scalar_select %p144, %s145, %s146
      %p150 = pneg %p144
      %p151 = scmp.eq.s32.totalorder %s19, 3
      %p152 = por %p150, %p151
      %p153 = scmp.ne.s32.totalorder %s145, %s148
      %p154 = scmp.eq.s32.totalorder %s19, 0
      %p155 = por %p153, %p154
      %p156 = scmp.ne.s32.totalorder %s145, %s148
      %p157 = scmp.eq.s32.totalorder %s24, 3
      %p158 = por %p156, %p157
      %p159 = scmp.ne.s32.totalorder %s148, %s149
      %p160 = scmp.eq.s32.totalorder %s24, 0
      %p161 = por %p159, %p160
      %p162 = scmp.ne.s32.totalorder %s148, %s149
      %p163 = scmp.eq.s32.totalorder %s25, 3
      %p164 = por %p162, %p163
      %p166 = scmp.ne.s32.totalorder %s149, %s165
      %p167 = scmp.eq.s32.totalorder %s25, 0
      %p168 = por %p166, %p167
      %p169 = scmp.le.s32.totalorder 1, %s19
      %p170 = scmp.lt.s32.totalorder %s19, 5
      %p171 = pnand %p169, %p170
      %p172 = pneg %p171
      // Predicated region
      $region9: #{_rasterize.1} parent=5 // pred_check
        _
      $region10: #{_rasterize.1} parent=5 // pred_check_branch
        %174 = sbr.rel (%p171) target = $region12
      $region11: #{_rasterize.1} parent=5 // pred_region
        %s175 = ssub.s32 %s19, 1
        // Predicated region
        $region13: #{_rasterize.1} parent=11 // pred_check
          %p176 = pneg %p59
        $region14: #{_rasterize.1} parent=11 // pred_check_branch
          %178 = sbr.rel (%p176) target = $region16
        $region15: #{_rasterize.1} parent=11 // pred_region
          %s180 = ssub.s32 16, 16
          %181 = vsyncadd [#allocation9], %s180
          %s183 = sshll.u32 %s0, 4
          %s184 = int_to_ptr.vmem [resolvable:$true] %s183
          %186 = dma.vmem_to_smem %s184, 16, [#allocation7], [#allocation9]
        $region16: #{_rasterize.1} parent=11 // pred_fallthru
          _
        // Predicated region
        $region17: #{_rasterize.1} parent=11 // pred_check
          %p187 = pneg %p80
        $region18: #{_rasterize.1} parent=11 // pred_check_branch
          %189 = sbr.rel (%p187) target = $region20
        $region19: #{_rasterize.1} parent=11 // pred_region
          %s191 = ssub.s32 16, 16
          %192 = vsyncadd [#allocation11], %s191
          %s194 = sshll.u32 %s1, 4
          %s195 = int_to_ptr.vmem [resolvable:$true] %s194
          %197 = dma.vmem_to_smem %s195, 16, [#allocation10], [#allocation11]
        $region20: #{_rasterize.1} parent=11 // pred_fallthru
          _
        // Predicated region
        $region21: #{_rasterize.1} parent=11 // pred_check
          %p198 = pneg %p101
        $region22: #{_rasterize.1} parent=11 // pred_check_branch
          %200 = sbr.rel (%p198) target = $region24
        $region23: #{_rasterize.1} parent=11 // pred_region
          %s202 = ssub.s32 64, 64
          %203 = vsyncadd [#allocation11], %s202
          %s205 = sshll.u32 %s2, 4
          %s206 = int_to_ptr.vmem [resolvable:$true] %s205
          %208 = dma.vmem_to_smem %s206, 64, [#allocation12], [#allocation11]
        $region24: #{_rasterize.1} parent=11 // pred_fallthru
          _
      $region12: #{_rasterize.1} parent=5 // pred_fallthru
        _
      %p209 = scmp.lt.s32.totalorder %s19, 4
      // Predicated region
      $region25: #{_rasterize.1} parent=5 // pred_check
        %p210 = pneg %p209
      $region26: #{_rasterize.1} parent=5 // pred_check_branch
        %212 = sbr.rel (%p210) target = $region28
      $region27: #{_rasterize.1} parent=5 // pred_region
        _
      $region28: #{_rasterize.1} parent=5 // pred_fallthru
        _
      %p213 = scmp.le.s32.totalorder 1, %s19
      %p214 = scmp.lt.s32.totalorder %s19, 5
      %p215 = pnand %p213, %p214
      %p216 = pneg %p215
      // Predicated region
      $region29: #{_rasterize.1} parent=5 // pred_check
        _
      $region30: #{_rasterize.1} parent=5 // pred_check_branch
        %218 = sbr.rel (%p215) target = $region32
      $region31: #{_rasterize.1} parent=5 // pred_region
        %s219 = ssub.s32 %s19, 1
        // Predicated region
        $region33: #{_rasterize.1} parent=31 // pred_check
          %p220 = pneg %p59
        $region34: #{_rasterize.1} parent=31 // pred_check_branch
          %222 = sbr.rel (%p220) target = $region36
        $region35: #{_rasterize.1} parent=31 // pred_region
          %223 = dma.done [#allocation9], 16
        $region36: #{_rasterize.1} parent=31 // pred_fallthru
          _
        // Predicated region
        $region37: #{_rasterize.1} parent=31 // pred_check
          %p224 = pneg %p80
        $region38: #{_rasterize.1} parent=31 // pred_check_branch
          %226 = sbr.rel (%p224) target = $region40
        $region39: #{_rasterize.1} parent=31 // pred_region
          %227 = dma.done [#allocation11], 16
        $region40: #{_rasterize.1} parent=31 // pred_fallthru
          _
        // Predicated region
        $region41: #{_rasterize.1} parent=31 // pred_check
          %p228 = pneg %p101
        $region42: #{_rasterize.1} parent=31 // pred_check_branch
          %230 = sbr.rel (%p228) target = $region44
        $region43: #{_rasterize.1} parent=31 // pred_region
          %231 = dma.done [#allocation11], 64
        $region44: #{_rasterize.1} parent=31 // pred_fallthru
          _
        %232 = sfence
        %p233 = pneg %p59
        %p234 = pneg %p56
        %p235 = pneg %p80
        %p236 = pneg %p77
        %p237 = pneg %p101
        %p238 = pneg %p98
        %p239 = pneg %p131
        %p240 = pneg %p128
        %s241 = sand.u32 %s118, 1
        %s242 = scalar_lea.sflag [#allocation8], %s241
        %s243 = sand.u32 %s118, 1
        %s244 = smul.addr %s243, 24
        %s245 = scalar_lea.vmem [#allocation13], %s244
        %p246 = pneg %p161
        %p247 = pneg %p158
        %s248 = sand.u32 %s148, 1
        %s249 = scalar_lea.sflag [#allocation15], %s248
        %s250 = sand.u32 %s148, 1
        %s251 = smul.addr %s250, 8
        %s252 = scalar_lea.vmem [#allocation14], %s251
        %v253 = vlaneseq
        %v254 = vshrl.u32 %v253, 7
        %s255 = smul.u32 %s30, 8
        %v256 = vstv %s255
        %v257 = vadd.s32 %v254, %v256
        %v258 = vlaneseq
        %v259 = vand.u32 %v258, 127
        %s260 = smul.u32 %s31, 16
        %v261 = vstv %s260
        %v262 = vadd.s32 %v259, %v261
        %v263 = vcvt.s32.f32 %v262
        %v264 = vadd.f32 %v263, 0.5
        %v265 = vmul.f32 %v264, 0.125
        %v266 = vsub.f32 %v265, 1.0
        %v267 = vcvt.s32.f32 %v257
        %v268 = vadd.f32 %v267, 0.5
        %v269 = vmul.f32 %v268, 0.125
        %v270 = vsub.f32 1.0, %v269
        %vm271 = vcmask 130048
        %272 = vst.msk [vmem:[#allocation2] sm:$0xff] %vm271, -inf
        %273 = vst.msk [vmem:[#allocation3] sm:$0xff] %vm271, 0.0
        %274 = vst.msk [vmem:[#allocation4] sm:$0xff] %vm271, 0.0
        %275 = vst.msk [vmem:[#allocation5] sm:$0xff] %vm271, 0.0
        %276 = vst.msk [vmem:[#allocation6] sm:$0xff] %vm271, 1.0
        %s277 = smul.u32 %s29, 198
        %s278 = smul.u32 %s29, 2
        %s279 = sadd.s32 %s278, %s30
        %s280 = sld [smem:[#allocation7 + %s279]]
        %s281 = sld [smem:[#allocation10 + %s279]]
        // While loop
        $region45: #{_rasterize.1} parent=31 // loop_pre_header
          _
        $region46: #{_rasterize.1} parent=31 // loop_header
          %s283 = sphi 0, %s285
          %p284 = scmp.ge.s32.totalorder %s283, %s281
        $region47: #{_rasterize.1} parent=31 // loop_header_branch
          %287 = sbr.rel (%p284) target = $region51
        $region48: #{_rasterize.1} parent=31 // loop_body
          %s288 = sadd.s32 %s277, %s280
          %s289 = sadd.s32 %s288, %s283
          %s290 = sld [smem:[#allocation12 + %s289]]
          %v291 = vstv %s290
          %v292 = vmul.f32 %v291, %v266
          %s293 = sadd.s32 %s289, 6
          %s294 = sld [smem:[#allocation12 + %s293]]
          %v295 = vstv %s294
          %v296 = vmul.f32 %v295, %v270
          %v297 = vadd.f32 %v292, %v296
          %s298 = sadd.s32 %s289, 12
          %s299 = sld [smem:[#allocation12 + %s298]]
          %v300 = vstv %s299
          %v301 = vadd.f32 %v297, %v300
          %s302 = sadd.s32 %s289, 18
          %s303 = sld [smem:[#allocation12 + %s302]]
          %v304 = vstv %s303
          %v305 = vmul.f32 %v304, %v266
          %s306 = sadd.s32 %s289, 24
          %s307 = sld [smem:[#allocation12 + %s306]]
          %v308 = vstv %s307
          %v309 = vmul.f32 %v308, %v270
          %v310 = vadd.f32 %v305, %v309
          %s311 = sadd.s32 %s289, 30
          %s312 = sld [smem:[#allocation12 + %s311]]
          %v313 = vstv %s312
          %v314 = vadd.f32 %v310, %v313
          %v315 = vsub.f32 1.0, %v301
          %v316 = vsub.f32 %v315, %v314
          %vm317 = vcmp.ge.f32.partialorder %v301, 0.0
          %vm318 = vcmp.ge.f32.partialorder %v314, 0.0
          %vm319 = vmand %vm317, %vm318
          %vm320 = vcmp.ge.f32.partialorder %v316, 0.0
          %vm321 = vmand %vm319, %vm320
          %s322 = sadd.s32 %s289, 36
          %s323 = sld [smem:[#allocation12 + %s322]]
          %v324 = vstv %s323
          %v325 = vmul.f32 %v301, %v324
          %s326 = sadd.s32 %s289, 42
          %s327 = sld [smem:[#allocation12 + %s326]]
          %v328 = vstv %s327
          %v329 = vmul.f32 %v314, %v328
          %v330 = vadd.f32 %v325, %v329
          %s331 = sadd.s32 %s289, 48
          %s332 = sld [smem:[#allocation12 + %s331]]
          %v333 = vstv %s332
          %v334 = vadd.f32 %v330, %v333
          %v335 = vld [vmem:[#allocation2] sm:$0xff]
          %vm336 = vcmp.gt.f32.partialorder %v334, %v335
          %vm337 = vmand %vm321, %vm336
          %v338 = vsel %vm337, %v334, %v335
          %339 = vst.msk [vmem:[#allocation2] sm:$0xff] %vm271, %v338
          %s340 = sadd.s32 %s289, 54
          %s341 = sld [smem:[#allocation12 + %s340]]
          %v342 = vstv %s341
          %v343 = vmul.f32 %v301, %v342
          %s344 = sadd.s32 %s289, 60
          %s345 = sld [smem:[#allocation12 + %s344]]
          %v346 = vstv %s345
          %v347 = vmul.f32 %v314, %v346
          %v348 = vadd.f32 %v343, %v347
          %s349 = sadd.s32 %s289, 66
          %s350 = sld [smem:[#allocation12 + %s349]]
          %v351 = vstv %s350
          %v352 = vadd.f32 %v348, %v351
          %v353 = vld [vmem:[#allocation3] sm:$0xff]
          %v354 = vsel %vm337, %v352, %v353
          %355 = vst.msk [vmem:[#allocation3] sm:$0xff] %vm271, %v354
          %s356 = sadd.s32 %s289, 72
          %s357 = sld [smem:[#allocation12 + %s356]]
          %v358 = vstv %s357
          %v359 = vmul.f32 %v301, %v358
          %s360 = sadd.s32 %s289, 78
          %s361 = sld [smem:[#allocation12 + %s360]]
          %v362 = vstv %s361
          %v363 = vmul.f32 %v314, %v362
          %v364 = vadd.f32 %v359, %v363
          %s365 = sadd.s32 %s289, 84
          %s366 = sld [smem:[#allocation12 + %s365]]
          %v367 = vstv %s366
          %v368 = vadd.f32 %v364, %v367
          %v369 = vld [vmem:[#allocation4] sm:$0xff]
          %v370 = vsel %vm337, %v368, %v369
          %371 = vst.msk [vmem:[#allocation4] sm:$0xff] %vm271, %v370
          %s372 = sadd.s32 %s289, 90
          %s373 = sld [smem:[#allocation12 + %s372]]
          %v374 = vstv %s373
          %v375 = vmul.f32 %v301, %v374
          %s376 = sadd.s32 %s289, 96
          %s377 = sld [smem:[#allocation12 + %s376]]
          %v378 = vstv %s377
          %v379 = vmul.f32 %v314, %v378
          %v380 = vadd.f32 %v375, %v379
          %s381 = sadd.s32 %s289, 102
          %s382 = sld [smem:[#allocation12 + %s381]]
          %v383 = vstv %s382
          %v384 = vadd.f32 %v380, %v383
          %v385 = vld [vmem:[#allocation5] sm:$0xff]
          %v386 = vsel %vm337, %v384, %v385
          %387 = vst.msk [vmem:[#allocation5] sm:$0xff] %vm271, %v386
          %s388 = sadd.s32 %s289, 108
          %s389 = sld [smem:[#allocation12 + %s388]]
          %s390 = sadd.s32 %s289, 114
          %s391 = sld [smem:[#allocation12 + %s390]]
          %s392 = sadd.s32 %s289, 120
          %s393 = sld [smem:[#allocation12 + %s392]]
          %s394 = sadd.s32 %s289, 126
          %s395 = sld [smem:[#allocation12 + %s394]]
          %s396 = sadd.s32 %s289, 132
          %s397 = sld [smem:[#allocation12 + %s396]]
          %v398 = vstv %s389
          %v399 = vsub.f32 %v266, %v398
          %v400 = vstv %s391
          %v401 = vsub.f32 %v270, %v400
          %v402 = vstv %s393
          %v403 = vmul.f32 %v399, %v402
          %v404 = vstv %s395
          %v405 = vmul.f32 %v401, %v404
          %v406 = vadd.f32 %v403, %v405
          %v407 = vstv %s397
          %v408 = vmul.f32 %v406, %v407
          %v409 = vmax.f32 %v408, 0.0
          %v410 = vmin.f32 %v409, 1.0
          %v411 = vmul.f32 %v410, %v402
          %v412 = vsub.f32 %v399, %v411
          %v413 = vmul.f32 %v410, %v404
          %v414 = vsub.f32 %v401, %v413
          %v415 = vmul.f32 %v412, %v412
          %v416 = vmul.f32 %v414, %v414
          %v417 = vadd.f32 %v415, %v416
          %s418 = sadd.s32 %s289, 138
          %s419 = sld [smem:[#allocation12 + %s418]]
          %s420 = sadd.s32 %s289, 144
          %s421 = sld [smem:[#allocation12 + %s420]]
          %s422 = sadd.s32 %s289, 150
          %s423 = sld [smem:[#allocation12 + %s422]]
          %s424 = sadd.s32 %s289, 156
          %s425 = sld [smem:[#allocation12 + %s424]]
          %s426 = sadd.s32 %s289, 162
          %s427 = sld [smem:[#allocation12 + %s426]]
          %v428 = vstv %s419
          %v429 = vsub.f32 %v266, %v428
          %v430 = vstv %s421
          %v431 = vsub.f32 %v270, %v430
          %v432 = vstv %s423
          %v433 = vmul.f32 %v429, %v432
          %v434 = vstv %s425
          %v435 = vmul.f32 %v431, %v434
          %v436 = vadd.f32 %v433, %v435
          %v437 = vstv %s427
          %v438 = vmul.f32 %v436, %v437
          %v439 = vmax.f32 %v438, 0.0
          %v440 = vmin.f32 %v439, 1.0
          %v441 = vmul.f32 %v440, %v432
          %v442 = vsub.f32 %v429, %v441
          %v443 = vmul.f32 %v440, %v434
          %v444 = vsub.f32 %v431, %v443
          %v445 = vmul.f32 %v442, %v442
          %v446 = vmul.f32 %v444, %v444
          %v447 = vadd.f32 %v445, %v446
          %s448 = sadd.s32 %s289, 168
          %s449 = sld [smem:[#allocation12 + %s448]]
          %s450 = sadd.s32 %s289, 174
          %s451 = sld [smem:[#allocation12 + %s450]]
          %s452 = sadd.s32 %s289, 180
          %s453 = sld [smem:[#allocation12 + %s452]]
          %s454 = sadd.s32 %s289, 186
          %s455 = sld [smem:[#allocation12 + %s454]]
          %s456 = sadd.s32 %s289, 192
          %s457 = sld [smem:[#allocation12 + %s456]]
          %v458 = vstv %s449
          %v459 = vsub.f32 %v266, %v458
          %v460 = vstv %s451
          %v461 = vsub.f32 %v270, %v460
          %v462 = vstv %s453
          %v463 = vmul.f32 %v459, %v462
          %v464 = vstv %s455
          %v465 = vmul.f32 %v461, %v464
          %v466 = vadd.f32 %v463, %v465
          %v467 = vstv %s457
          %v468 = vmul.f32 %v466, %v467
          %v469 = vmax.f32 %v468, 0.0
          %v470 = vmin.f32 %v469, 1.0
          %v471 = vmul.f32 %v470, %v462
          %v472 = vsub.f32 %v459, %v471
          %v473 = vmul.f32 %v470, %v464
          %v474 = vsub.f32 %v461, %v473
          %v475 = vmul.f32 %v472, %v472
          %v476 = vmul.f32 %v474, %v474
          %v477 = vadd.f32 %v475, %v476
          %v478 = vmin.f32 %v447, %v477
          %v479 = vmin.f32 %v417, %v478
          %v480 = vmul.f32 %v479, -7000.0
          %v481 = vmul.f32 %v480, 1.442695
          %v482 = vpow.pop %v481
          %v483 = vsel %vm321, 1.0, %v482
          %v484 = vld [vmem:[#allocation6] sm:$0xff]
          %v485 = vsub.f32 1.0, %v483
          %v486 = vmul.f32 %v484, %v485
          %487 = vst.msk [vmem:[#allocation6] sm:$0xff] %vm271, %v486
        $region49: #{_rasterize.1} parent=31 // loop_footer
          %s285 = sadd.s32 %s283, 1
        $region50: #{_rasterize.1} parent=31 // loop_footer_branch
          %282 = sbr.rel target = $region46
        $region51: #{_rasterize.1} parent=31 // loop_exit
          _
        %v488 = vld [vmem:[#allocation3] sm:$0xff]
        %489 = vst.msk [vmem:[%s245] sm:$0xff] %vm271, %v488
        %v490 = vld [vmem:[#allocation4] sm:$0xff]
        %s491 = scalar_lea.vmem %s245, 8 [#allocation13]
        %492 = vst.msk [vmem:[%s491] sm:$0xff] %vm271, %v490
        %v493 = vld [vmem:[#allocation5] sm:$0xff]
        %s494 = scalar_lea.vmem %s245, 16 [#allocation13]
        %495 = vst.msk [vmem:[%s494] sm:$0xff] %vm271, %v493
        %v496 = vld [vmem:[#allocation6] sm:$0xff]
        %v497 = vsub.f32 1.0, %v496
        %498 = vst.msk [vmem:[%s252] sm:$0xff] %vm271, %v497
        %s499 = sand.u32 %s118, 1
        %s500 = scalar_lea.sflag [#allocation8], %s499
        %s501 = sand.u32 %s118, 1
        %s502 = smul.addr %s501, 24
        %s503 = scalar_lea.vmem [#allocation13], %s502
        %s504 = sand.u32 %s148, 1
        %s505 = scalar_lea.sflag [#allocation15], %s504
        %s506 = sand.u32 %s148, 1
        %s507 = smul.addr %s506, 8
        %s508 = scalar_lea.vmem [#allocation14], %s507
        // Predicated region
        $region52: #{_rasterize.1} parent=31 // pred_check
          %p509 = pneg %p128
        $region53: #{_rasterize.1} parent=31 // pred_check_branch
          %511 = sbr.rel (%p509) target = $region55
        $region54: #{_rasterize.1} parent=31 // pred_region
          %s513 = ssub.s32 384, 384
          %514 = vsyncadd %s500, %s513
          %s515 = sadd.s32 %s31, %s30
          %s516 = smul.addr %s29, 6
          %s517 = sadd.s32 %s515, %s516
          %s518 = smul.addr %s517, 128
          %s519 = scalar_lea.hbm %s3, %s518
          %s520 = sshll.u32 %s503, 4
          %s521 = int_to_ptr.vmem [resolvable:$true] %s520
          %526 = dma.vmem_to_hbm [thread:$0]  %s521, 384, %s519, %s500, 128, 256, 8
        $region55: #{_rasterize.1} parent=31 // pred_fallthru
          _
        // Predicated region
        $region56: #{_rasterize.1} parent=31 // pred_check
          %p527 = pneg %p158
        $region57: #{_rasterize.1} parent=31 // pred_check_branch
          %529 = sbr.rel (%p527) target = $region59
        $region58: #{_rasterize.1} parent=31 // pred_region
          %s531 = ssub.s32 128, 128
          %532 = vsyncadd %s505, %s531
          %s533 = sadd.s32 %s31, %s30
          %s534 = smul.addr %s29, 2
          %s535 = sadd.s32 %s533, %s534
          %s536 = smul.addr %s535, 128
          %s537 = scalar_lea.hbm %s4, %s536
          %s539 = sshll.u32 %s508, 4
          %s540 = int_to_ptr.vmem [resolvable:$true] %s539
          %542 = dma.vmem_to_hbm [thread:$0]  %s540, 128, %s537, %s505
        $region59: #{_rasterize.1} parent=31 // pred_fallthru
          _
      $region32: #{_rasterize.1} parent=5 // pred_fallthru
        _
      %p543 = scmp.le.s32.totalorder 2, %s19
      // Predicated region
      $region60: #{_rasterize.1} parent=5 // pred_check
        %p544 = pneg %p543
      $region61: #{_rasterize.1} parent=5 // pred_check_branch
        %546 = sbr.rel (%p544) target = $region63
      $region62: #{_rasterize.1} parent=5 // pred_region
        %s547 = ssub.s32 %s19, 2
        // Predicated region
        $region64: #{_rasterize.1} parent=62 // pred_check
          %p548 = pneg %p134
        $region65: #{_rasterize.1} parent=62 // pred_check_branch
          %550 = sbr.rel (%p548) target = $region67
        $region66: #{_rasterize.1} parent=62 // pred_region
          %s551 = sand.u32 %s119, 1
          %s552 = scalar_lea.sflag [#allocation8], %s551
          %s553 = sand.u32 %s119, 1
          %s554 = smul.addr %s553, 24
          %s555 = scalar_lea.vmem [#allocation13], %s554
          %556 = dma.done %s552, 384
        $region67: #{_rasterize.1} parent=62 // pred_fallthru
          _
        // Predicated region
        $region68: #{_rasterize.1} parent=62 // pred_check
          %p557 = pneg %p164
        $region69: #{_rasterize.1} parent=62 // pred_check_branch
          %559 = sbr.rel (%p557) target = $region71
        $region70: #{_rasterize.1} parent=62 // pred_region
          %s560 = sand.u32 %s149, 1
          %s561 = scalar_lea.sflag [#allocation15], %s560
          %s562 = sand.u32 %s149, 1
          %s563 = smul.addr %s562, 8
          %s564 = scalar_lea.vmem [#allocation14], %s563
          %565 = dma.done %s561, 128
        $region71: #{_rasterize.1} parent=62 // pred_fallthru
          _
      $region63: #{_rasterize.1} parent=5 // pred_fallthru
        _
    $region6: #{_rasterize.1} parent=1 // loop_footer
      %s23 = sadd.s32 1, %s19
    $region7: #{_rasterize.1} parent=1 // loop_footer_branch
      %18 = sbr.rel target = $region3
    $region8: #{_rasterize.1} parent=1 // loop_exit
      _
    %566 = vsyncpa [#allocation8], 1
    %s567 = scalar_lea.sflag [#allocation8], 1
    %568 = vsyncpa %s567, 1
    %569 = vsyncpa [#allocation15], 1
    %s570 = scalar_lea.sflag [#allocation15], 1
    %571 = vsyncpa %s570, 1
    %572 = vsyncpa [#allocation9], 1
    %s573 = scalar_lea.sflag [#allocation9], 1
    %574 = vsyncpa %s573, 1
    %575 = vsyncpa [#allocation11], 1

</llo_original>
